<compile_context>
chip_gen: v7x
topology: tpu7x:2x2x1
jax: 0.10.0
libtpu: 0.0.40
codegen_flags: <defaults>
</compile_context>

<pallas_src>
import functools

import numpy as np
import jax
import jax.numpy as jnp
from jax.experimental import pallas as pl
from jax.experimental.pallas import tpu as pltpu


def _cdiv(a, b):
    return -(-a // b)


def _round_up(x, m):
    return ((x + m - 1) // m) * m


@functools.cache
def _device_defaults():
    """(group, row_tile, vmem_limit_bytes) tuned per TPU generation."""
    kind = ""
    try:
        kind = jax.devices()[0].device_kind.lower()
    except Exception:
        pass
    is_v5e = ("v5 lite" in kind) or ("v5lite" in kind) or ("v5e" in kind)
    is_v7 = "7" in kind
    # group = samples packed per kernel row.  8 -> 256-lane output and a 256x256
    # second matmul (one v6e/v7x MXU tile).  On v5e use 4: 128 lanes is still a full
    # vreg, the second matmul is one 128x128 v5e MXU tile, and the block-diagonal
    # FLOP inflation drops from 8x to 4x on the weakest MXU.
    group = 4 if is_v5e else 8
    # Per-step VMEM at G=8, f32 output, per packed row (includes the h/y temps the
    # previous version did not budget):
    #   x in  (f32, double-buffered)         2*G*A*4     =  256 B
    #   out   (f32, double-buffered)         2*G*H*4     = 2048 B
    #   h f32 + h bf16 + y f32 temporaries   G*H*(4+2+4) = 2560 B
    # ~4.75 KiB/row -> TR=8192 ~ 38 MiB (+ ~0.3 MiB weights): fits 48 MiB on v7x
    # (64 MiB/TC physical) and easily 64 MiB on v5e/v6e (128 MiB physical).
    row_tile = 8192
    vmem_limit = (48 if is_v7 else 64) * 1024 * 1024
    return group, row_tile, vmem_limit


def _action_encoder_kernel(x_ref, w1_ref, b1_ref, w2_ref, b2_ref, o_ref):
    # x arrives f32 from HBM (tiny next to the output); cast to bf16 in VMEM so both
    # matmuls run at the MXU's native bf16 rate.  Accumulate in f32 via
    # preferred_element_type; bias add and LeakyReLU stay in f32.
    x = x_ref[...].astype(jnp.bfloat16)                                    # [TR, G*A]
    h = jnp.dot(x, w1_ref[...], preferred_element_type=jnp.float32) + b1_ref[...]
    h = jnp.maximum(h, 0.1 * h)                                            # LeakyReLU(0.1)
    y = jnp.dot(h.astype(jnp.bfloat16), w2_ref[...],
                preferred_element_type=jnp.float32) + b2_ref[...]
    y = jnp.maximum(y, 0.1 * y)                                            # LeakyReLU(0.1)
    o_ref[...] = y.astype(o_ref.dtype)


def pack_params(w1, b1, w2, b2, *, group):
    """Precompute (ONCE, at init) the block-diagonal bf16 weights the kernel consumes.

    w1: [A, H], b1: [1, H], w2: [H, H], b2: [1, H] (f32, stored transposed [in, out]).
    """
    H = w1.shape[1]
    eye_g = jnp.eye(group, dtype=jnp.float32)
    w1_bd = jnp.kron(eye_g, w1.astype(jnp.float32)).astype(jnp.bfloat16)      # [G*A, G*H]
    w2_bd = jnp.kron(eye_g, w2.astype(jnp.float32)).astype(jnp.bfloat16)      # [G*H, G*H]
    b1_t = jnp.tile(jnp.reshape(b1, (1, H)).astype(jnp.float32), (1, group))  # [1, G*H]
    b2_t = jnp.tile(jnp.reshape(b2, (1, H)).astype(jnp.float32), (1, group))  # [1, G*H]
    return w1_bd, b1_t, w2_bd, b2_t


def _build_call(nb, TR, GA, GH, out_shape, vmem_limit_bytes, cost, single_buffer_weights):
    if single_buffer_weights:
        # Grid-invariant operands: one VMEM buffer is enough (frees ~0.3 MiB and
        # removes useless buffer rotation).
        def wspec(shape):
            return pl.BlockSpec(shape, lambda i: (0, 0),
                                pipeline_mode=pl.Buffered(buffer_count=1))
    else:
        def wspec(shape):
            return pl.BlockSpec(shape, lambda i: (0, 0))
    return pl.pallas_call(
        _action_encoder_kernel,
        out_shape=out_shape,
        grid=(nb,),
        in_specs=[
            pl.BlockSpec((TR, GA), lambda i: (i, 0)),   # packed activations (pipelined)
            wspec((GA, GH)),                            # W1 block-diag (VMEM-resident)
            wspec((1, GH)),                             # b1 tiled
            wspec((GH, GH)),                            # W2 block-diag
            wspec((1, GH)),                             # b2 tiled
        ],
        out_specs=pl.BlockSpec((TR, GH), lambda i: (i, 0)),
        compiler_params=pltpu.CompilerParams(
            dimension_semantics=("parallel",),          # shards steps across v7x's 2 TCs
            vmem_limit_bytes=vmem_limit_bytes,
        ),
        cost_estimate=cost,
    )


_SINGLE_BUFFER_WEIGHTS_OK = True   # flipped off if this JAX rejects pipeline_mode


def action_encoder(action, w1_bd, b1_t, w2_bd, b2_t, *, row_tile=None,
                   vmem_limit_bytes=None, out_dtype=jnp.float32, min_steps=8):
    """Fused MLP forward.  action: [B, A] f32 (or None).  Returns [B, H] in out_dtype.

    w1_bd/b1_t/w2_bd/b2_t come from pack_params() (computed once at init).
    """
    global _SINGLE_BUFFER_WEIGHTS_OK
    if action is None:
        return None

    B, A = action.shape
    GA, GH = w1_bd.shape
    G = GA // A
    H = GH // G

    _, d_row_tile, d_vmem = _device_defaults()
    row_tile = d_row_tile if row_tile is None else row_tile
    vmem_limit_bytes = d_vmem if vmem_limit_bytes is None else vmem_limit_bytes

    # Pack G samples per lane-dense row.  Only the sub-G remainder (< G rows) is
    # zero-padded; when B % G == 0 both the pad and the trailing [:B] slice vanish.
    R = _cdiv(B, G)
    pad = R * G - B
    if pad:
        action = jnp.concatenate([action, jnp.zeros((pad, A), action.dtype)], axis=0)
    xp = action.reshape(R, GA)

    # Grid sizing: biggest blocks that fit the VMEM budget, but keep >= min_steps
    # steps (when the batch allows) so the auto-pipeline overlaps DMA with compute,
    # and an even step count so v7x's two TensorCores stay balanced.
    nb = max(_cdiv(R, row_tile), min(min_steps, _cdiv(R, 8)))
    if nb > 1:
        nb = _round_up(nb, 2)
    TR = _round_up(_cdiv(R, nb), 8)
    nb = _cdiv(R, TR)                       # grid steps actually launched

    out_itemsize = np.dtype(out_dtype).itemsize
    cost = pl.CostEstimate(
        flops=2 * R * (GA * GH + GH * GH),  # as executed (block-diagonal inflated)
        transcendentals=0,
        bytes_accessed=(4 * R * GA + out_itemsize * R * GH
                        + 2 * (GA * GH + GH * GH) + 4 * 2 * GH),
    )
    out_shape = jax.ShapeDtypeStruct((R, GH), out_dtype)

    args = (xp, w1_bd, b1_t, w2_bd, b2_t)
    if _SINGLE_BUFFER_WEIGHTS_OK:
        try:
            out = _build_call(nb, TR, GA, GH, out_shape, vmem_limit_bytes, cost, True)(*args)
        except Exception:
            _SINGLE_BUFFER_WEIGHTS_OK = False
            out = _build_call(nb, TR, GA, GH, out_shape, vmem_limit_bytes, cost, False)(*args)
    else:
        out = _build_call(nb, TR, GA, GH, out_shape, vmem_limit_bytes, cost, False)(*args)

    # Unpack [R, G*H] -> [R*G, H]; trim only if the batch needed sub-G padding.
    out = out.reshape(R * G, H)
    return out[:B] if pad else out


def init_params(key, action_dim, hidden=32):
    """Deterministic init mirroring nn.Linear shapes (stored transposed [in, out])."""
    k1, k2, k3, k4 = jax.random.split(key, 4)
    lim1 = 1.0 / jnp.sqrt(action_dim)
    lim2 = 1.0 / jnp.sqrt(hidden)
    w1 = jax.random.uniform(k1, (action_dim, hidden), jnp.float32, -lim1, lim1)
    b1 = jax.random.uniform(k2, (1, hidden), jnp.float32, -lim1, lim1)
    w2 = jax.random.uniform(k3, (hidden, hidden), jnp.float32, -lim2, lim2)
    b2 = jax.random.uniform(k4, (1, hidden), jnp.float32, -lim2, lim2)
    return w1, b1, w2, b2


def _reference(action, w1, b1, w2, b2):
    """Pure-JAX reference with the kernel's numerics (bf16 operands, f32 accumulation)."""
    h = jnp.dot(action.astype(jnp.bfloat16), w1.astype(jnp.bfloat16),
                preferred_element_type=jnp.float32) + b1
    h = jnp.where(h >= 0, h, 0.1 * h)
    y = jnp.dot(h.astype(jnp.bfloat16), w2.astype(jnp.bfloat16),
                preferred_element_type=jnp.float32) + b2
    return jnp.where(y >= 0, y, 0.1 * y)


if __name__ == "__main__":
    key = jax.random.PRNGKey(0)
    k_x, k_p, k_big = jax.random.split(key, 3)

    batch, action_dim, hidden = 10, 4, 32      # small demo; exercises sub-G pad + trim
    action = jax.random.normal(k_x, (batch, action_dim), dtype=jnp.float32)
    w1, b1, w2, b2 = init_params(k_p, action_dim, hidden)

    group, _, _ = _device_defaults()
    packed = pack_params(w1, b1, w2, b2, group=group)   # precomputed once at init

    out = jax.block_until_ready(action_encoder(action, *packed))
    ref = _reference(action, w1, b1, w2, b2)
    assert out.shape == (batch, hidden)
    assert jnp.allclose(out, ref, atol=1e-3, rtol=1e-3)

    # Larger batch: exercises the multi-step pipelined grid (>= 8 even steps).
    big = jax.random.normal(k_big, (40_000, action_dim), dtype=jnp.float32)
    out_big = jax.block_until_ready(action_encoder(big, *packed))
    ref_big = _reference(big, w1, b1, w2, b2)
    assert out_big.shape == (40_000, hidden)
    assert jnp.allclose(out_big, ref_big, atol=1e-3, rtol=1e-3)

    print("KERNEL_OK")
</pallas_src>

<mosaic_0001>
module attributes {stable_mosaic.version = 11 : i64} {
  func.func @_action_encoder_kernel(%arg0: i32, %arg1: memref<8x32xf32, #tpu.memory_space<vmem>>, %arg2: memref<32x256xbf16, #tpu.memory_space<vmem>>, %arg3: memref<1x256xf32, #tpu.memory_space<vmem>>, %arg4: memref<256x256xbf16, #tpu.memory_space<vmem>>, %arg5: memref<1x256xf32, #tpu.memory_space<vmem>>, %arg6: memref<8x256xf32, #tpu.memory_space<vmem>>) attributes {dimension_semantics = [#tpu.dimension_semantics<parallel>], iteration_bounds = array<i64: 1>, scalar_prefetch = 0 : i64, scratch_operands = 0 : i64, tpu.core_type = #tpu.core_type<tc>, window_params = [{transform_indices = @transform_0, window_bounds = array<i64: 8, 32>}, {pipeline_mode = #tpu.pipeline_mode<synchronous>, transform_indices = @transform_1, window_bounds = array<i64: 32, 256>}, {pipeline_mode = #tpu.pipeline_mode<synchronous>, transform_indices = @transform_2, window_bounds = array<i64: 1, 256>}, {pipeline_mode = #tpu.pipeline_mode<synchronous>, transform_indices = @transform_3, window_bounds = array<i64: 256, 256>}, {pipeline_mode = #tpu.pipeline_mode<synchronous>, transform_indices = @transform_4, window_bounds = array<i64: 1, 256>}, {transform_indices = @transform_5, window_bounds = array<i64: 8, 256>}]} {
    %c0 = arith.constant 0 : index
    %c0_0 = arith.constant 0 : index
    %0 = vector.load %arg1[%c0, %c0_0] : memref<8x32xf32, #tpu.memory_space<vmem>>, vector<8x32xf32>
    %1 = arith.truncf %0 : vector<8x32xf32> to vector<8x32xbf16>
    %c0_1 = arith.constant 0 : index
    %c0_2 = arith.constant 0 : index
    %2 = vector.load %arg2[%c0_1, %c0_2] : memref<32x256xbf16, #tpu.memory_space<vmem>>, vector<32x256xbf16>
    %cst = arith.constant dense<0.000000e+00> : vector<8x256xf32>
    %3 = tpu.matmul %1, %2, %cst {dimension_numbers = #tpu.dot_dimension_numbers<[1], [0], [0], [1], [0, 0, 1, 1], [], []>} : vector<8x32xbf16>, vector<32x256xbf16>, vector<8x256xf32> -> vector<8x256xf32>
    %c0_3 = arith.constant 0 : index
    %c0_4 = arith.constant 0 : index
    %4 = vector.load %arg3[%c0_3, %c0_4] : memref<1x256xf32, #tpu.memory_space<vmem>>, vector<1x256xf32>
    %5 = vector.broadcast %4 : vector<1x256xf32> to vector<8x256xf32>
    %6 = arith.addf %3, %5 : vector<8x256xf32>
    %cst_5 = arith.constant 1.000000e-01 : f32
    %7 = vector.broadcast %cst_5 : f32 to vector<8x256xf32>
    %8 = arith.mulf %7, %6 : vector<8x256xf32>
    %9 = arith.maximumf %6, %8 : vector<8x256xf32>
    %10 = arith.truncf %9 : vector<8x256xf32> to vector<8x256xbf16>
    %c0_6 = arith.constant 0 : index
    %c0_7 = arith.constant 0 : index
    %11 = vector.load %arg4[%c0_6, %c0_7] : memref<256x256xbf16, #tpu.memory_space<vmem>>, vector<256x256xbf16>
    %cst_8 = arith.constant dense<0.000000e+00> : vector<8x256xf32>
    %12 = tpu.matmul %10, %11, %cst_8 {dimension_numbers = #tpu.dot_dimension_numbers<[1], [0], [0], [1], [0, 0, 1, 1], [], []>} : vector<8x256xbf16>, vector<256x256xbf16>, vector<8x256xf32> -> vector<8x256xf32>
    %c0_9 = arith.constant 0 : index
    %c0_10 = arith.constant 0 : index
    %13 = vector.load %arg5[%c0_9, %c0_10] : memref<1x256xf32, #tpu.memory_space<vmem>>, vector<1x256xf32>
    %14 = vector.broadcast %13 : vector<1x256xf32> to vector<8x256xf32>
    %15 = arith.addf %12, %14 : vector<8x256xf32>
    %cst_11 = arith.constant 1.000000e-01 : f32
    %16 = vector.broadcast %cst_11 : f32 to vector<8x256xf32>
    %17 = arith.mulf %16, %15 : vector<8x256xf32>
    %18 = arith.maximumf %15, %17 : vector<8x256xf32>
    %c0_12 = arith.constant 0 : index
    %c0_13 = arith.constant 0 : index
    %19 = vector.load %arg6[%c0_12, %c0_13] : memref<8x256xf32, #tpu.memory_space<vmem>>, vector<8x256xf32>
    tpu.vector_store %arg6[%c0_12, %c0_13], %18 {strides = array<i32>} : memref<8x256xf32, #tpu.memory_space<vmem>>, vector<8x256xf32>,
    return
  }
  func.func @transform_0(%arg0: i32) -> (i32, i32) {
    %c0_i32 = arith.constant 0 : i32
    %c0_i32_0 = arith.constant 0 : i32
    return %arg0, %c0_i32 : i32, i32
  }
  func.func @transform_1(%arg0: i32) -> (i32, i32) {
    %c0_i32 = arith.constant 0 : i32
    %c0_i32_0 = arith.constant 0 : i32
    %c0_i32_1 = arith.constant 0 : i32
    return %c0_i32, %c0_i32_0 : i32, i32
  }
  func.func @transform_2(%arg0: i32) -> (i32, i32) {
    %c0_i32 = arith.constant 0 : i32
    %c0_i32_0 = arith.constant 0 : i32
    %c0_i32_1 = arith.constant 0 : i32
    return %c0_i32, %c0_i32_0 : i32, i32
  }
  func.func @transform_3(%arg0: i32) -> (i32, i32) {
    %c0_i32 = arith.constant 0 : i32
    %c0_i32_0 = arith.constant 0 : i32
    %c0_i32_1 = arith.constant 0 : i32
    return %c0_i32, %c0_i32_0 : i32, i32
  }
  func.func @transform_4(%arg0: i32) -> (i32, i32) {
    %c0_i32 = arith.constant 0 : i32
    %c0_i32_0 = arith.constant 0 : i32
    %c0_i32_1 = arith.constant 0 : i32
    return %c0_i32, %c0_i32_0 : i32, i32
  }
  func.func @transform_5(%arg0: i32) -> (i32, i32) {
    %c0_i32 = arith.constant 0 : i32
    %c0_i32_0 = arith.constant 0 : i32
    return %arg0, %c0_i32 : i32, i32
  }
}

module attributes {stable_mosaic.version = 11 : i64} {
  func.func @_action_encoder_kernel(%arg0: i32, %arg1: memref<8x32xf32, #tpu.memory_space<vmem>>, %arg2: memref<32x256xbf16, #tpu.memory_space<vmem>>, %arg3: memref<1x256xf32, #tpu.memory_space<vmem>>, %arg4: memref<256x256xbf16, #tpu.memory_space<vmem>>, %arg5: memref<1x256xf32, #tpu.memory_space<vmem>>, %arg6: memref<8x256xf32, #tpu.memory_space<vmem>>) attributes {dimension_semantics = [#tpu.dimension_semantics<parallel>], iteration_bounds = array<i64: 1>, scalar_prefetch = 0 : i64, scratch_operands = 0 : i64, tpu.core_type = #tpu.core_type<tc>, window_params = [{transform_indices = @transform_0, window_bounds = array<i64: 8, 32>}, {pipeline_mode = #tpu.pipeline_mode<synchronous>, transform_indices = @transform_1, window_bounds = array<i64: 32, 256>}, {pipeline_mode = #tpu.pipeline_mode<synchronous>, transform_indices = @transform_2, window_bounds = array<i64: 1, 256>}, {pipeline_mode = #tpu.pipeline_mode<synchronous>, transform_indices = @transform_3, window_bounds = array<i64: 256, 256>}, {pipeline_mode = #tpu.pipeline_mode<synchronous>, transform_indices = @transform_4, window_bounds = array<i64: 1, 256>}, {transform_indices = @transform_5, window_bounds = array<i64: 8, 256>}]} {
    %c0 = arith.constant 0 : index
    %c0_0 = arith.constant 0 : index
    %0 = vector.load %arg1[%c0, %c0_0] : memref<8x32xf32, #tpu.memory_space<vmem>>, vector<8x32xf32>
    %1 = arith.truncf %0 : vector<8x32xf32> to vector<8x32xbf16>
    %c0_1 = arith.constant 0 : index
    %c0_2 = arith.constant 0 : index
    %2 = vector.load %arg2[%c0_1, %c0_2] : memref<32x256xbf16, #tpu.memory_space<vmem>>, vector<32x256xbf16>
    %cst = arith.constant dense<0.000000e+00> : vector<8x256xf32>
    %3 = tpu.matmul %1, %2, %cst {dimension_numbers = #tpu.dot_dimension_numbers<[1], [0], [0], [1], [0, 0, 1, 1], [], []>} : vector<8x32xbf16>, vector<32x256xbf16>, vector<8x256xf32> -> vector<8x256xf32>
    %c0_3 = arith.constant 0 : index
    %c0_4 = arith.constant 0 : index
    %4 = vector.load %arg3[%c0_3, %c0_4] : memref<1x256xf32, #tpu.memory_space<vmem>>, vector<1x256xf32>
    %5 = vector.broadcast %4 : vector<1x256xf32> to vector<8x256xf32>
    %6 = arith.addf %3, %5 : vector<8x256xf32>
    %cst_5 = arith.constant 1.000000e-01 : f32
    %7 = vector.broadcast %cst_5 : f32 to vector<8x256xf32>
    %8 = arith.mulf %7, %6 : vector<8x256xf32>
    %9 = arith.maximumf %6, %8 : vector<8x256xf32>
    %10 = arith.truncf %9 : vector<8x256xf32> to vector<8x256xbf16>
    %c0_6 = arith.constant 0 : index
    %c0_7 = arith.constant 0 : index
    %11 = vector.load %arg4[%c0_6, %c0_7] : memref<256x256xbf16, #tpu.memory_space<vmem>>, vector<256x256xbf16>
    %cst_8 = arith.constant dense<0.000000e+00> : vector<8x256xf32>
    %12 = tpu.matmul %10, %11, %cst_8 {dimension_numbers = #tpu.dot_dimension_numbers<[1], [0], [0], [1], [0, 0, 1, 1], [], []>} : vector<8x256xbf16>, vector<256x256xbf16>, vector<8x256xf32> -> vector<8x256xf32>
    %c0_9 = arith.constant 0 : index
    %c0_10 = arith.constant 0 : index
    %13 = vector.load %arg5[%c0_9, %c0_10] : memref<1x256xf32, #tpu.memory_space<vmem>>, vector<1x256xf32>
    %14 = vector.broadcast %13 : vector<1x256xf32> to vector<8x256xf32>
    %15 = arith.addf %12, %14 : vector<8x256xf32>
    %cst_11 = arith.constant 1.000000e-01 : f32
    %16 = vector.broadcast %cst_11 : f32 to vector<8x256xf32>
    %17 = arith.mulf %16, %15 : vector<8x256xf32>
    %18 = arith.maximumf %15, %17 : vector<8x256xf32>
    %c0_12 = arith.constant 0 : index
    %c0_13 = arith.constant 0 : index
    %19 = vector.load %arg6[%c0_12, %c0_13] : memref<8x256xf32, #tpu.memory_space<vmem>>, vector<8x256xf32>
    tpu.vector_store %arg6[%c0_12, %c0_13], %18 {strides = array<i32>} : memref<8x256xf32, #tpu.memory_space<vmem>>, vector<8x256xf32>,
    return
  }
  func.func @transform_0(%arg0: i32) -> (i32, i32) {
    %c0_i32 = arith.constant 0 : i32
    %c0_i32_0 = arith.constant 0 : i32
    return %arg0, %c0_i32 : i32, i32
  }
  func.func @transform_1(%arg0: i32) -> (i32, i32) {
    %c0_i32 = arith.constant 0 : i32
    %c0_i32_0 = arith.constant 0 : i32
    %c0_i32_1 = arith.constant 0 : i32
    return %c0_i32, %c0_i32_0 : i32, i32
  }
  func.func @transform_2(%arg0: i32) -> (i32, i32) {
    %c0_i32 = arith.constant 0 : i32
    %c0_i32_0 = arith.constant 0 : i32
    %c0_i32_1 = arith.constant 0 : i32
    return %c0_i32, %c0_i32_0 : i32, i32
  }
  func.func @transform_3(%arg0: i32) -> (i32, i32) {
    %c0_i32 = arith.constant 0 : i32
    %c0_i32_0 = arith.constant 0 : i32
    %c0_i32_1 = arith.constant 0 : i32
    return %c0_i32, %c0_i32_0 : i32, i32
  }
  func.func @transform_4(%arg0: i32) -> (i32, i32) {
    %c0_i32 = arith.constant 0 : i32
    %c0_i32_0 = arith.constant 0 : i32
    %c0_i32_1 = arith.constant 0 : i32
    return %c0_i32, %c0_i32_0 : i32, i32
  }
  func.func @transform_5(%arg0: i32) -> (i32, i32) {
    %c0_i32 = arith.constant 0 : i32
    %c0_i32_0 = arith.constant 0 : i32
    return %arg0, %c0_i32 : i32, i32
  }
}

</mosaic_0001>

<llo_original>
// kernel: tpu_custom_call.1
$region0: #{tpu_custom_call.1}
  #allocation0 [shape = 'u32[]', space=smem, size = 0x4, offset = 0x4, fixed_abs, tag = 'smem constant byte address 0x4 - core index']
  #allocation1 [shape = 'u32[144,128]{1,0:T(1,128)}', space=vmem, size = 0x12000, scoped, tag = 'internal scratch']
  %s0 = inlined_call_operand.hbm [shape: f32[2,32], index: 0, kind: input, shape index: {}]
  %s1 = inlined_call_operand.hbm [shape: bf16[32,256], index: 1, kind: input, shape index: {}]
  %s2 = inlined_call_operand.hbm [shape: f32[1,256], index: 2, kind: input, shape index: {}]
  %s3 = inlined_call_operand.hbm [shape: bf16[256,256], index: 3, kind: input, shape index: {}]
  %s4 = inlined_call_operand.hbm [shape: f32[1,256], index: 4, kind: input, shape index: {}]
  %s5 = inlined_call_operand.hbm [shape: f32[2,256], index: 5, kind: output, shape index: {}]
  %s6 = sld [smem:[#allocation0]]
  $region50: #{tpu_custom_call.1} parent=0
    _
  %s8 = ssub.s32 1, %s6
  %s9 = scalar_select 0, %s8, %s6
  $region1: #{tpu_custom_call.1} parent=0
    #allocation2 [shape = 'u8[4096]{0}', space=vmem, size = 0x1000, scoped, tag = 'input window, operand 0, single buffered']
    #allocation3 [shape = 's32[1]{0}', space=sflag, size = 0x4, scoped, tag = 'scoped memory for tpu_custom_call.1']
    #allocation4 [shape = 's32[1]{0}', space=sflag, size = 0x4, scoped, tag = 'scoped memory for tpu_custom_call.1']
    #allocation5 [shape = 'u8[16384]{0}', space=vmem, size = 0x4000, scoped, tag = 'input window, operand 1, single buffered']
    #allocation6 [shape = 's32[1]{0}', space=sflag, size = 0x4, scoped, tag = 'scoped memory for tpu_custom_call.1']
    #allocation7 [shape = 'u8[1024]{0}', space=vmem, size = 0x400, scoped, tag = 'input window, operand 2, single buffered']
    #allocation8 [shape = 'u8[131072]{0}', space=vmem, size = 0x20000, scoped, tag = 'input window, operand 3, single buffered']
    #allocation9 [shape = 's32[1]{0}', space=sflag, size = 0x4, scoped, tag = 'scoped memory for tpu_custom_call.1']
    #allocation10 [shape = 'u8[1024]{0}', space=vmem, size = 0x400, scoped, tag = 'input window, operand 4, single buffered']
    #allocation11 [shape = 'u8[8192]{0}', space=vmem, size = 0x2000, scoped, tag = 'output window, operand 0, single buffered']
    %10 = vsyncpa [#allocation3], 0
    %11 = vsyncpa [#allocation6], 0
    %12 = vsyncpa [#allocation9], 0
    %13 = vsyncpa [#allocation4], 0
    // Predicated region
    $region2: #{tpu_custom_call.1} parent=1 // pred_check
      _
    $region3: #{tpu_custom_call.1} parent=1 // pred_check_branch
      %15 = sbr.rel (0) target = $region5
    $region4: #{tpu_custom_call.1} parent=1 // pred_region
      %s17 = ssub.s32 128, 32
      %18 = vsyncadd [#allocation3], %s17
      %s19 = sshll.u32 [#allocation2], 4
      %s20 = int_to_ptr.vmem [resolvable:$true] %s19
      %25 = dma.hbm_to_vmem [thread:$0]  %s0, 32, %s20, [#allocation3], 32, 32, 2
    $region5: #{tpu_custom_call.1} parent=1 // pred_fallthru
      _
    // Predicated region
    $region6: #{tpu_custom_call.1} parent=1 // pred_check
      _
    $region7: #{tpu_custom_call.1} parent=1 // pred_check_branch
      %27 = sbr.rel (0) target = $region9
    $region8: #{tpu_custom_call.1} parent=1 // pred_region
      %s29 = ssub.s32 512, 512
      %30 = vsyncadd [#allocation6], %s29
      %s31 = sshll.u32 [#allocation5], 4
      %s32 = int_to_ptr.vmem [resolvable:$true] %s31
      %37 = dma.hbm_to_vmem [thread:$0]  %s1, 512, %s32, [#allocation6], 128, 128, 8
    $region9: #{tpu_custom_call.1} parent=1 // pred_fallthru
      _
    // Predicated region
    $region10: #{tpu_custom_call.1} parent=1 // pred_check
      _
    $region11: #{tpu_custom_call.1} parent=1 // pred_check_branch
      %39 = sbr.rel (0) target = $region13
    $region12: #{tpu_custom_call.1} parent=1 // pred_region
      %s41 = ssub.s32 32, 32
      %42 = vsyncadd [#allocation6], %s41
      %s44 = sshll.u32 [#allocation7], 4
      %s45 = int_to_ptr.vmem [resolvable:$true] %s44
      %47 = dma.hbm_to_vmem [thread:$0]  %s2, 32, %s45, [#allocation6]
    $region13: #{tpu_custom_call.1} parent=1 // pred_fallthru
      _
    // Predicated region
    $region14: #{tpu_custom_call.1} parent=1 // pred_check
      _
    $region15: #{tpu_custom_call.1} parent=1 // pred_check_branch
      %49 = sbr.rel (0) target = $region17
    $region16: #{tpu_custom_call.1} parent=1 // pred_region
      %s51 = ssub.s32 4096, 4096
      %52 = vsyncadd [#allocation9], %s51
      %s53 = sshll.u32 [#allocation8], 4
      %s54 = int_to_ptr.vmem [resolvable:$true] %s53
      %59 = dma.hbm_to_vmem [thread:$0]  %s3, 4096, %s54, [#allocation9], 128, 128, 8
    $region17: #{tpu_custom_call.1} parent=1 // pred_fallthru
      _
    // Predicated region
    $region18: #{tpu_custom_call.1} parent=1 // pred_check
      _
    $region19: #{tpu_custom_call.1} parent=1 // pred_check_branch
      %61 = sbr.rel (0) target = $region21
    $region20: #{tpu_custom_call.1} parent=1 // pred_region
      %s63 = ssub.s32 32, 32
      %64 = vsyncadd [#allocation9], %s63
      %s66 = sshll.u32 [#allocation10], 4
      %s67 = int_to_ptr.vmem [resolvable:$true] %s66
      %69 = dma.hbm_to_vmem [thread:$0]  %s4, 32, %s67, [#allocation9]
    $region21: #{tpu_custom_call.1} parent=1 // pred_fallthru
      _
    // Predicated region
    $region22: #{tpu_custom_call.1} parent=1 // pred_check
      _
    $region23: #{tpu_custom_call.1} parent=1 // pred_check_branch
      %71 = sbr.rel (0) target = $region25
    $region24: #{tpu_custom_call.1} parent=1 // pred_region
      %72 = dma.done [#allocation3], 128
    $region25: #{tpu_custom_call.1} parent=1 // pred_fallthru
      _
    // Predicated region
    $region26: #{tpu_custom_call.1} parent=1 // pred_check
      _
    $region27: #{tpu_custom_call.1} parent=1 // pred_check_branch
      %74 = sbr.rel (0) target = $region29
    $region28: #{tpu_custom_call.1} parent=1 // pred_region
      %75 = dma.done [#allocation6], 512
    $region29: #{tpu_custom_call.1} parent=1 // pred_fallthru
      _
    // Predicated region
    $region30: #{tpu_custom_call.1} parent=1 // pred_check
      _
    $region31: #{tpu_custom_call.1} parent=1 // pred_check_branch
      %77 = sbr.rel (0) target = $region33
    $region32: #{tpu_custom_call.1} parent=1 // pred_region
      %78 = dma.done [#allocation6], 32
    $region33: #{tpu_custom_call.1} parent=1 // pred_fallthru
      _
    // Predicated region
    $region34: #{tpu_custom_call.1} parent=1 // pred_check
      _
    $region35: #{tpu_custom_call.1} parent=1 // pred_check_branch
      %80 = sbr.rel (0) target = $region37
    $region36: #{tpu_custom_call.1} parent=1 // pred_region
      %81 = dma.done [#allocation9], 4096
    $region37: #{tpu_custom_call.1} parent=1 // pred_fallthru
      _
    // Predicated region
    $region38: #{tpu_custom_call.1} parent=1 // pred_check
      _
    $region39: #{tpu_custom_call.1} parent=1 // pred_check_branch
      %83 = sbr.rel (0) target = $region41
    $region40: #{tpu_custom_call.1} parent=1 // pred_region
      %84 = dma.done [#allocation9], 32
    $region41: #{tpu_custom_call.1} parent=1 // pred_fallthru
      _
    %v86 = vld [vmem:[#allocation2] sm:$0xff]
    %v87 = vpack.c.bf16 %v86, %v86
    %v88 = vld [vmem:[#allocation5] sm:$0xff]
    %v89 = vld [vmem:[#allocation5 + $0x8] sm:$0xff]
    %v90 = vld [vmem:[#allocation5 + $0x10] sm:$0xff]
    %v91 = vld [vmem:[#allocation5 + $0x18] sm:$0xff]
    %v92 = vld [vmem:[#allocation7] sm:$0x3]
    %v94 = vlaneseq
    %v95 = vshrl.u32 %v94, 7
    %v96 = vsub.s32 0, %v95
    %v97 = vrot.slane %v92, %v96
    %v98 = vlaneseq
    %v99 = vshrl.u32 %v98, 7
    %v100 = vsub.s32 1, %v99
    %v101 = vrot.slane %v92, %v100
    %v108 = vunpack.c.l.b16 %v88
    %v109 = vunpack.c.h.b16 %v88
    %v110 = vunpack.c.l.b16 %v89
    %v111 = vunpack.c.h.b16 %v89
    %v112 = vunpack.c.l.b16 %v90
    %v113 = vunpack.c.h.b16 %v90
    %v114 = vunpack.c.l.b16 %v91
    %v115 = vunpack.c.h.b16 %v91
    %v116 = vpack.c.b16 %v110, %v108
    %v117 = vpack.c.b16 %v111, %v109
    %v118 = vpack.c.b16 %v114, %v112
    %v119 = vpack.c.b16 %v115, %v113
    %vm124 = vcmask 261120
    %v126 = vsel %vm124, %v87, 0
    %128 = vmatprep.subr.bf16.mxu0 %v117
    %129 = vmatpush1.bf16.msra.mxu0 %v116
    %130 = vmatprep.subr.bf16.mxu0 %v119
    %131 = vmatpush1.bf16.msra.mxu0 %v118
    %132 = vmatprep.subr.bf16.mxu0 0
    %133 = vmatpush1.bf16.msra.mxu0 0
    %134 = vmatprep.subr.bf16.mxu0 0
    %135 = vmatpush1.bf16.msra.mxu0 0
    %136 = vmatprep.subr.bf16.mxu0 0
    %137 = vmatpush1.bf16.msra.mxu0 0
    %138 = vmatprep.subr.bf16.mxu0 0
    %139 = vmatpush1.bf16.msra.mxu0 0
    %140 = vmatprep.subr.bf16.mxu0 0
    %141 = vmatpush1.bf16.msra.mxu0 0
    %142 = vmatprep.subr.bf16.mxu0 0
    %143 = vmatpush1.bf16.msra.mxu0 0
    %144 = vmatprep.subr.bf16.mxu0 0
    %145 = vmatpush1.bf16.msra.mxu0 0
    %146 = vmatprep.subr.bf16.mxu0 0
    %147 = vmatpush1.bf16.msra.mxu0 0
    %148 = vmatprep.subr.bf16.mxu0 0
    %149 = vmatpush1.bf16.msra.mxu0 0
    %150 = vmatprep.subr.bf16.mxu0 0
    %151 = vmatpush1.bf16.msra.mxu0 0
    %152 = vmatprep.subr.bf16.mxu0 0
    %153 = vmatpush1.bf16.msra.mxu0 0
    %154 = vmatprep.subr.bf16.mxu0 0
    %155 = vmatpush1.bf16.msra.mxu0 0
    %156 = vmatprep.subr.bf16.mxu0 0
    %157 = vmatpush1.bf16.msra.mxu0 0
    %158 = vmatprep.subr.bf16.mxu0 0
    %159 = vmatpush1.bf16.msra.mxu0 0
    %160 = vmatprep.mubr.bf16.mxu0 0
    %161 = vmatmul.mubr.bf16.gmra.mrb[0].mxu0 %v126
    %v162 = vpop.f32.mrb[0].mxu0
    %v163 = vadd.f32 %v97, %v162
    %v164 = vpop.f32.mrb[0].mxu0
    %v165 = vadd.f32 %v101, %v164
    %v166 = vpop.f32.mrb[0].mxu0
    %v167 = vpop.f32.mrb[0].mxu0
    %168 = vdwg.mxu0
    %v169 = vmul.f32 %v163, 0.1
    %v170 = vmul.f32 %v165, 0.1
    %v171 = vmax.f32 %v163, %v169
    %v172 = vmax.f32 %v165, %v170
    %v173 = vpack.c.bf16 %v171, %v171
    %v174 = vpack.c.bf16 %v172, %v172
    %v175 = vld [vmem:[#allocation8] sm:$0xff]
    %v176 = vld [vmem:[#allocation8 + $0x8] sm:$0xff]
    %v177 = vld [vmem:[#allocation8 + $0x10] sm:$0xff]
    %v178 = vld [vmem:[#allocation8 + $0x18] sm:$0xff]
    %v179 = vld [vmem:[#allocation8 + $0x20] sm:$0xff]
    %v180 = vld [vmem:[#allocation8 + $0x28] sm:$0xff]
    %v181 = vld [vmem:[#allocation8 + $0x30] sm:$0xff]
    %v182 = vld [vmem:[#allocation8 + $0x38] sm:$0xff]
    %v183 = vld [vmem:[#allocation8 + $0x40] sm:$0xff]
    %v184 = vld [vmem:[#allocation8 + $0x48] sm:$0xff]
    %v185 = vld [vmem:[#allocation8 + $0x50] sm:$0xff]
    %v186 = vld [vmem:[#allocation8 + $0x58] sm:$0xff]
    %v187 = vld [vmem:[#allocation8 + $0x60] sm:$0xff]
    %v188 = vld [vmem:[#allocation8 + $0x68] sm:$0xff]
    %v189 = vld [vmem:[#allocation8 + $0x70] sm:$0xff]
    %v190 = vld [vmem:[#allocation8 + $0x78] sm:$0xff]
    %v191 = vld [vmem:[#allocation8 + $0x80] sm:$0xff]
    %v192 = vld [vmem:[#allocation8 + $0x88] sm:$0xff]
    %v193 = vld [vmem:[#allocation8 + $0x90] sm:$0xff]
    %v194 = vld [vmem:[#allocation8 + $0x98] sm:$0xff]
    %v195 = vld [vmem:[#allocation8 + $0xa0] sm:$0xff]
    %v196 = vld [vmem:[#allocation8 + $0xa8] sm:$0xff]
    %v197 = vld [vmem:[#allocation8 + $0xb0] sm:$0xff]
    %v198 = vld [vmem:[#allocation8 + $0xb8] sm:$0xff]
    %v199 = vld [vmem:[#allocation8 + $0xc0] sm:$0xff]
    %v200 = vld [vmem:[#allocation8 + $0xc8] sm:$0xff]
    %v201 = vld [vmem:[#allocation8 + $0xd0] sm:$0xff]
    %v202 = vld [vmem:[#allocation8 + $0xd8] sm:$0xff]
    %v203 = vld [vmem:[#allocation8 + $0xe0] sm:$0xff]
    %v204 = vld [vmem:[#allocation8 + $0xe8] sm:$0xff]
    %v205 = vld [vmem:[#allocation8 + $0xf0] sm:$0xff]
    %v206 = vld [vmem:[#allocation8 + $0xf8] sm:$0xff]
    %v207 = vld [vmem:[#allocation10] sm:$0x3]
    %v209 = vlaneseq
    %v210 = vshrl.u32 %v209, 7
    %v211 = vsub.s32 0, %v210
    %v212 = vrot.slane %v207, %v211
    %v213 = vlaneseq
    %v214 = vshrl.u32 %v213, 7
    %v215 = vsub.s32 1, %v214
    %v216 = vrot.slane %v207, %v215
    %v251 = vunpack.c.l.b16 %v175
    %v252 = vunpack.c.h.b16 %v175
    %v253 = vunpack.c.l.b16 %v176
    %v254 = vunpack.c.h.b16 %v176
    %v255 = vunpack.c.l.b16 %v177
    %v256 = vunpack.c.h.b16 %v177
    %v257 = vunpack.c.l.b16 %v178
    %v258 = vunpack.c.h.b16 %v178
    %v259 = vunpack.c.l.b16 %v179
    %v260 = vunpack.c.h.b16 %v179
    %v261 = vunpack.c.l.b16 %v180
    %v262 = vunpack.c.h.b16 %v180
    %v263 = vunpack.c.l.b16 %v181
    %v264 = vunpack.c.h.b16 %v181
    %v265 = vunpack.c.l.b16 %v182
    %v266 = vunpack.c.h.b16 %v182
    %v267 = vunpack.c.l.b16 %v183
    %v268 = vunpack.c.h.b16 %v183
    %v269 = vunpack.c.l.b16 %v184
    %v270 = vunpack.c.h.b16 %v184
    %v271 = vunpack.c.l.b16 %v185
    %v272 = vunpack.c.h.b16 %v185
    %v273 = vunpack.c.l.b16 %v186
    %v274 = vunpack.c.h.b16 %v186
    %v275 = vunpack.c.l.b16 %v187
    %v276 = vunpack.c.h.b16 %v187
    %v277 = vunpack.c.l.b16 %v188
    %v278 = vunpack.c.h.b16 %v188
    %v279 = vunpack.c.l.b16 %v189
    %v280 = vunpack.c.h.b16 %v189
    %v281 = vunpack.c.l.b16 %v190
    %v282 = vunpack.c.h.b16 %v190
    %v283 = vunpack.c.l.b16 %v191
    %v284 = vunpack.c.h.b16 %v191
    %v285 = vunpack.c.l.b16 %v192
    %v286 = vunpack.c.h.b16 %v192
    %v287 = vunpack.c.l.b16 %v193
    %v288 = vunpack.c.h.b16 %v193
    %v289 = vunpack.c.l.b16 %v194
    %v290 = vunpack.c.h.b16 %v194
    %v291 = vunpack.c.l.b16 %v195
    %v292 = vunpack.c.h.b16 %v195
    %v293 = vunpack.c.l.b16 %v196
    %v294 = vunpack.c.h.b16 %v196
    %v295 = vunpack.c.l.b16 %v197
    %v296 = vunpack.c.h.b16 %v197
    %v297 = vunpack.c.l.b16 %v198
    %v298 = vunpack.c.h.b16 %v198
    %v299 = vunpack.c.l.b16 %v199
    %v300 = vunpack.c.h.b16 %v199
    %v301 = vunpack.c.l.b16 %v200
    %v302 = vunpack.c.h.b16 %v200
    %v303 = vunpack.c.l.b16 %v201
    %v304 = vunpack.c.h.b16 %v201
    %v305 = vunpack.c.l.b16 %v202
    %v306 = vunpack.c.h.b16 %v202
    %v307 = vunpack.c.l.b16 %v203
    %v308 = vunpack.c.h.b16 %v203
    %v309 = vunpack.c.l.b16 %v204
    %v310 = vunpack.c.h.b16 %v204
    %v311 = vunpack.c.l.b16 %v205
    %v312 = vunpack.c.h.b16 %v205
    %v313 = vunpack.c.l.b16 %v206
    %v314 = vunpack.c.h.b16 %v206
    %v315 = vpack.c.b16 %v253, %v251
    %v316 = vpack.c.b16 %v254, %v252
    %v317 = vpack.c.b16 %v257, %v255
    %v318 = vpack.c.b16 %v258, %v256
    %v319 = vpack.c.b16 %v261, %v259
    %v320 = vpack.c.b16 %v262, %v260
    %v321 = vpack.c.b16 %v265, %v263
    %v322 = vpack.c.b16 %v266, %v264
    %v323 = vpack.c.b16 %v269, %v267
    %v324 = vpack.c.b16 %v270, %v268
    %v325 = vpack.c.b16 %v273, %v271
    %v326 = vpack.c.b16 %v274, %v272
    %v327 = vpack.c.b16 %v277, %v275
    %v328 = vpack.c.b16 %v278, %v276
    %v329 = vpack.c.b16 %v281, %v279
    %v330 = vpack.c.b16 %v282, %v280
    %v331 = vpack.c.b16 %v285, %v283
    %v332 = vpack.c.b16 %v286, %v284
    %v333 = vpack.c.b16 %v289, %v287
    %v334 = vpack.c.b16 %v290, %v288
    %v335 = vpack.c.b16 %v293, %v291
    %v336 = vpack.c.b16 %v294, %v292
    %v337 = vpack.c.b16 %v297, %v295
    %v338 = vpack.c.b16 %v298, %v296
    %v339 = vpack.c.b16 %v301, %v299
    %v340 = vpack.c.b16 %v302, %v300
    %v341 = vpack.c.b16 %v305, %v303
    %v342 = vpack.c.b16 %v306, %v304
    %v343 = vpack.c.b16 %v309, %v307
    %v344 = vpack.c.b16 %v310, %v308
    %v345 = vpack.c.b16 %v313, %v311
    %v346 = vpack.c.b16 %v314, %v312
    %379 = vmatprep.subr.bf16.mxu0 %v316
    %380 = vmatpush1.bf16.msra.mxu0 %v315
    %381 = vmatprep.subr.bf16.mxu0 %v318
    %382 = vmatpush1.bf16.msra.mxu0 %v317
    %383 = vmatprep.subr.bf16.mxu0 %v320
    %384 = vmatpush1.bf16.msra.mxu0 %v319
    %385 = vmatprep.subr.bf16.mxu0 %v322
    %386 = vmatpush1.bf16.msra.mxu0 %v321
    %387 = vmatprep.subr.bf16.mxu0 %v324
    %388 = vmatpush1.bf16.msra.mxu0 %v323
    %389 = vmatprep.subr.bf16.mxu0 %v326
    %390 = vmatpush1.bf16.msra.mxu0 %v325
    %391 = vmatprep.subr.bf16.mxu0 %v328
    %392 = vmatpush1.bf16.msra.mxu0 %v327
    %393 = vmatprep.subr.bf16.mxu0 %v330
    %394 = vmatpush1.bf16.msra.mxu0 %v329
    %395 = vmatprep.subr.bf16.mxu0 %v332
    %396 = vmatpush1.bf16.msra.mxu0 %v331
    %397 = vmatprep.subr.bf16.mxu0 %v334
    %398 = vmatpush1.bf16.msra.mxu0 %v333
    %399 = vmatprep.subr.bf16.mxu0 %v336
    %400 = vmatpush1.bf16.msra.mxu0 %v335
    %401 = vmatprep.subr.bf16.mxu0 %v338
    %402 = vmatpush1.bf16.msra.mxu0 %v337
    %403 = vmatprep.subr.bf16.mxu0 %v340
    %404 = vmatpush1.bf16.msra.mxu0 %v339
    %405 = vmatprep.subr.bf16.mxu0 %v342
    %406 = vmatpush1.bf16.msra.mxu0 %v341
    %407 = vmatprep.subr.bf16.mxu0 %v344
    %408 = vmatpush1.bf16.msra.mxu0 %v343
    %409 = vmatprep.subr.bf16.mxu0 %v346
    %410 = vmatpush1.bf16.msra.mxu0 %v345
    %411 = vmatprep.mubr.bf16.mxu0 %v174
    %412 = vmatmul.mubr.bf16.gmra.mrb[0].mxu0 %v173
    %v413 = vpop.f32.mrb[0].mxu0
    %v414 = vadd.f32 %v212, %v413
    %v415 = vpop.f32.mrb[0].mxu0
    %v416 = vadd.f32 %v216, %v415
    %v417 = vpop.f32.mrb[0].mxu0
    %v418 = vpop.f32.mrb[0].mxu0
    %419 = vdwg.mxu0
    %v420 = vmul.f32 %v414, 0.1
    %v421 = vmul.f32 %v416, 0.1
    %v422 = vmax.f32 %v414, %v420
    %v423 = vmax.f32 %v416, %v421
    %v426 = vcombine.low %v422, %v423
    %v427 = vcombine.high %v422, %v423
    %v429 = vunpack.c.l.s4 1983009808
    %v430 = vunpack.c.0.s8 %v429
    %v431 = vlaneseq
    %v432 = vshrl.u32 %v431, 7
    %v433 = vsub.s32 %v430, %v432
    %v434 = vrot.slane %v426, %v433
    %v436 = vunpack.c.l.s4 1983009808
    %v437 = vunpack.c.0.s8 %v436
    %v438 = vlaneseq
    %v439 = vshrl.u32 %v438, 7
    %v440 = vsub.s32 %v437, %v439
    %v441 = vrot.slane %v427, %v440
    %v442 = vcombine.high %v434, %v434
    %v443 = vcombine.high %v441, %v441
    %448 = vst [vmem:[#allocation11] sm:$0xf] %v434
    %449 = vst [vmem:[#allocation11 + $0x4] sm:$0xf] %v442
    %450 = vst [vmem:[#allocation11 + $0x8] sm:$0xf] %v441
    %451 = vst [vmem:[#allocation11 + $0xc] sm:$0xf] %v443
    // Predicated region
    $region42: #{tpu_custom_call.1} parent=1 // pred_check
      _
    $region43: #{tpu_custom_call.1} parent=1 // pred_check_branch
      %453 = sbr.rel (0) target = $region45
    $region44: #{tpu_custom_call.1} parent=1 // pred_region
      %s455 = ssub.s32 256, 64
      %456 = vsyncadd [#allocation4], %s455
      %s457 = sshll.u32 [#allocation11], 4
      %s458 = int_to_ptr.vmem [resolvable:$true] %s457
      %463 = dma.vmem_to_hbm [thread:$0]  %s458, 64, %s5, [#allocation4], 64, 64, 4
    $region45: #{tpu_custom_call.1} parent=1 // pred_fallthru
      _
    // Predicated region
    $region46: #{tpu_custom_call.1} parent=1 // pred_check
      _
    $region47: #{tpu_custom_call.1} parent=1 // pred_check_branch
      %465 = sbr.rel (0) target = $region49
    $region48: #{tpu_custom_call.1} parent=1 // pred_region
      %466 = dma.done [#allocation4], 256
    $region49: #{tpu_custom_call.1} parent=1 // pred_fallthru
      _
    %467 = vsyncpa [#allocation3], 1
    %468 = vsyncpa [#allocation6], 1
    %469 = vsyncpa [#allocation9], 1
    %470 = vsyncpa [#allocation4], 1

// kernel: tpu_custom_call.1
$region0: #{tpu_custom_call.1}
  #allocation0 [shape = 'u32[]', space=smem, size = 0x4, offset = 0x4, fixed_abs, tag = 'smem constant byte address 0x4 - core index']
  #allocation1 [shape = 'u32[144,128]{1,0:T(1,128)}', space=vmem, size = 0x12000, scoped, tag = 'internal scratch']
  %s0 = inlined_call_operand.hbm [shape: f32[2,32], index: 0, kind: input, shape index: {}]
  %s1 = inlined_call_operand.hbm [shape: bf16[32,256], index: 1, kind: input, shape index: {}]
  %s2 = inlined_call_operand.hbm [shape: f32[1,256], index: 2, kind: input, shape index: {}]
  %s3 = inlined_call_operand.hbm [shape: bf16[256,256], index: 3, kind: input, shape index: {}]
  %s4 = inlined_call_operand.hbm [shape: f32[1,256], index: 4, kind: input, shape index: {}]
  %s5 = inlined_call_operand.hbm [shape: f32[2,256], index: 5, kind: output, shape index: {}]
  %s6 = sld [smem:[#allocation0]]
  $region50: #{tpu_custom_call.1} parent=0
    _
  %s8 = ssub.s32 1, %s6
  %s9 = scalar_select 0, %s8, %s6
  $region1: #{tpu_custom_call.1} parent=0
    #allocation2 [shape = 'u8[4096]{0}', space=vmem, size = 0x1000, scoped, tag = 'input window, operand 0, single buffered']
    #allocation3 [shape = 's32[1]{0}', space=sflag, size = 0x4, scoped, tag = 'scoped memory for tpu_custom_call.1']
    #allocation4 [shape = 's32[1]{0}', space=sflag, size = 0x4, scoped, tag = 'scoped memory for tpu_custom_call.1']
    #allocation5 [shape = 'u8[16384]{0}', space=vmem, size = 0x4000, scoped, tag = 'input window, operand 1, single buffered']
    #allocation6 [shape = 's32[1]{0}', space=sflag, size = 0x4, scoped, tag = 'scoped memory for tpu_custom_call.1']
    #allocation7 [shape = 'u8[1024]{0}', space=vmem, size = 0x400, scoped, tag = 'input window, operand 2, single buffered']
    #allocation8 [shape = 'u8[131072]{0}', space=vmem, size = 0x20000, scoped, tag = 'input window, operand 3, single buffered']
    #allocation9 [shape = 's32[1]{0}', space=sflag, size = 0x4, scoped, tag = 'scoped memory for tpu_custom_call.1']
    #allocation10 [shape = 'u8[1024]{0}', space=vmem, size = 0x400, scoped, tag = 'input window, operand 4, single buffered']
    #allocation11 [shape = 'u8[8192]{0}', space=vmem, size = 0x2000, scoped, tag = 'output window, operand 0, single buffered']
    %10 = vsyncpa [#allocation3], 0
    %11 = vsyncpa [#allocation6], 0
    %12 = vsyncpa [#allocation9], 0
    %13 = vsyncpa [#allocation4], 0
    // Predicated region
    $region2: #{tpu_custom_call.1} parent=1 // pred_check
      _
    $region3: #{tpu_custom_call.1} parent=1 // pred_check_branch
      %15 = sbr.rel (0) target = $region5
    $region4: #{tpu_custom_call.1} parent=1 // pred_region
      %s17 = ssub.s32 128, 32
      %18 = vsyncadd [#allocation3], %s17
      %s19 = sshll.u32 [#allocation2], 4
      %s20 = int_to_ptr.vmem [resolvable:$true] %s19
      %25 = dma.hbm_to_vmem [thread:$0]  %s0, 32, %s20, [#allocation3], 32, 32, 2
    $region5: #{tpu_custom_call.1} parent=1 // pred_fallthru
      _
    // Predicated region
    $region6: #{tpu_custom_call.1} parent=1 // pred_check
      _
    $region7: #{tpu_custom_call.1} parent=1 // pred_check_branch
      %27 = sbr.rel (0) target = $region9
    $region8: #{tpu_custom_call.1} parent=1 // pred_region
      %s29 = ssub.s32 512, 512
      %30 = vsyncadd [#allocation6], %s29
      %s31 = sshll.u32 [#allocation5], 4
      %s32 = int_to_ptr.vmem [resolvable:$true] %s31
      %37 = dma.hbm_to_vmem [thread:$0]  %s1, 512, %s32, [#allocation6], 128, 128, 8
    $region9: #{tpu_custom_call.1} parent=1 // pred_fallthru
      _
    // Predicated region
    $region10: #{tpu_custom_call.1} parent=1 // pred_check
      _
    $region11: #{tpu_custom_call.1} parent=1 // pred_check_branch
      %39 = sbr.rel (0) target = $region13
    $region12: #{tpu_custom_call.1} parent=1 // pred_region
      %s41 = ssub.s32 32, 32
      %42 = vsyncadd [#allocation6], %s41
      %s44 = sshll.u32 [#allocation7], 4
      %s45 = int_to_ptr.vmem [resolvable:$true] %s44
      %47 = dma.hbm_to_vmem [thread:$0]  %s2, 32, %s45, [#allocation6]
    $region13: #{tpu_custom_call.1} parent=1 // pred_fallthru
      _
    // Predicated region
    $region14: #{tpu_custom_call.1} parent=1 // pred_check
      _
    $region15: #{tpu_custom_call.1} parent=1 // pred_check_branch
      %49 = sbr.rel (0) target = $region17
    $region16: #{tpu_custom_call.1} parent=1 // pred_region
      %s51 = ssub.s32 4096, 4096
      %52 = vsyncadd [#allocation9], %s51
      %s53 = sshll.u32 [#allocation8], 4
      %s54 = int_to_ptr.vmem [resolvable:$true] %s53
      %59 = dma.hbm_to_vmem [thread:$0]  %s3, 4096, %s54, [#allocation9], 128, 128, 8
    $region17: #{tpu_custom_call.1} parent=1 // pred_fallthru
      _
    // Predicated region
    $region18: #{tpu_custom_call.1} parent=1 // pred_check
      _
    $region19: #{tpu_custom_call.1} parent=1 // pred_check_branch
      %61 = sbr.rel (0) target = $region21
    $region20: #{tpu_custom_call.1} parent=1 // pred_region
      %s63 = ssub.s32 32, 32
      %64 = vsyncadd [#allocation9], %s63
      %s66 = sshll.u32 [#allocation10], 4
      %s67 = int_to_ptr.vmem [resolvable:$true] %s66
      %69 = dma.hbm_to_vmem [thread:$0]  %s4, 32, %s67, [#allocation9]
    $region21: #{tpu_custom_call.1} parent=1 // pred_fallthru
      _
    // Predicated region
    $region22: #{tpu_custom_call.1} parent=1 // pred_check
      _
    $region23: #{tpu_custom_call.1} parent=1 // pred_check_branch
      %71 = sbr.rel (0) target = $region25
    $region24: #{tpu_custom_call.1} parent=1 // pred_region
      %72 = dma.done [#allocation3], 128
    $region25: #{tpu_custom_call.1} parent=1 // pred_fallthru
      _
    // Predicated region
    $region26: #{tpu_custom_call.1} parent=1 // pred_check
      _
    $region27: #{tpu_custom_call.1} parent=1 // pred_check_branch
      %74 = sbr.rel (0) target = $region29
    $region28: #{tpu_custom_call.1} parent=1 // pred_region
      %75 = dma.done [#allocation6], 512
    $region29: #{tpu_custom_call.1} parent=1 // pred_fallthru
      _
    // Predicated region
    $region30: #{tpu_custom_call.1} parent=1 // pred_check
      _
    $region31: #{tpu_custom_call.1} parent=1 // pred_check_branch
      %77 = sbr.rel (0) target = $region33
    $region32: #{tpu_custom_call.1} parent=1 // pred_region
      %78 = dma.done [#allocation6], 32
    $region33: #{tpu_custom_call.1} parent=1 // pred_fallthru
      _
    // Predicated region
    $region34: #{tpu_custom_call.1} parent=1 // pred_check
      _
    $region35: #{tpu_custom_call.1} parent=1 // pred_check_branch
      %80 = sbr.rel (0) target = $region37
    $region36: #{tpu_custom_call.1} parent=1 // pred_region
      %81 = dma.done [#allocation9], 4096
    $region37: #{tpu_custom_call.1} parent=1 // pred_fallthru
      _
    // Predicated region
    $region38: #{tpu_custom_call.1} parent=1 // pred_check
      _
    $region39: #{tpu_custom_call.1} parent=1 // pred_check_branch
      %83 = sbr.rel (0) target = $region41
    $region40: #{tpu_custom_call.1} parent=1 // pred_region
      %84 = dma.done [#allocation9], 32
    $region41: #{tpu_custom_call.1} parent=1 // pred_fallthru
      _
    %v86 = vld [vmem:[#allocation2] sm:$0xff]
    %v87 = vpack.c.bf16 %v86, %v86
    %v88 = vld [vmem:[#allocation5] sm:$0xff]
    %v89 = vld [vmem:[#allocation5 + $0x8] sm:$0xff]
    %v90 = vld [vmem:[#allocation5 + $0x10] sm:$0xff]
    %v91 = vld [vmem:[#allocation5 + $0x18] sm:$0xff]
    %v92 = vld [vmem:[#allocation7] sm:$0x3]
    %v94 = vlaneseq
    %v95 = vshrl.u32 %v94, 7
    %v96 = vsub.s32 0, %v95
    %v97 = vrot.slane %v92, %v96
    %v98 = vlaneseq
    %v99 = vshrl.u32 %v98, 7
    %v100 = vsub.s32 1, %v99
    %v101 = vrot.slane %v92, %v100
    %v108 = vunpack.c.l.b16 %v88
    %v109 = vunpack.c.h.b16 %v88
    %v110 = vunpack.c.l.b16 %v89
    %v111 = vunpack.c.h.b16 %v89
    %v112 = vunpack.c.l.b16 %v90
    %v113 = vunpack.c.h.b16 %v90
    %v114 = vunpack.c.l.b16 %v91
    %v115 = vunpack.c.h.b16 %v91
    %v116 = vpack.c.b16 %v110, %v108
    %v117 = vpack.c.b16 %v111, %v109
    %v118 = vpack.c.b16 %v114, %v112
    %v119 = vpack.c.b16 %v115, %v113
    %vm124 = vcmask 261120
    %v126 = vsel %vm124, %v87, 0
    %128 = vmatprep.subr.bf16.mxu0 %v117
    %129 = vmatpush1.bf16.msra.mxu0 %v116
    %130 = vmatprep.subr.bf16.mxu0 %v119
    %131 = vmatpush1.bf16.msra.mxu0 %v118
    %132 = vmatprep.subr.bf16.mxu0 0
    %133 = vmatpush1.bf16.msra.mxu0 0
    %134 = vmatprep.subr.bf16.mxu0 0
    %135 = vmatpush1.bf16.msra.mxu0 0
    %136 = vmatprep.subr.bf16.mxu0 0
    %137 = vmatpush1.bf16.msra.mxu0 0
    %138 = vmatprep.subr.bf16.mxu0 0
    %139 = vmatpush1.bf16.msra.mxu0 0
    %140 = vmatprep.subr.bf16.mxu0 0
    %141 = vmatpush1.bf16.msra.mxu0 0
    %142 = vmatprep.subr.bf16.mxu0 0
    %143 = vmatpush1.bf16.msra.mxu0 0
    %144 = vmatprep.subr.bf16.mxu0 0
    %145 = vmatpush1.bf16.msra.mxu0 0
    %146 = vmatprep.subr.bf16.mxu0 0
    %147 = vmatpush1.bf16.msra.mxu0 0
    %148 = vmatprep.subr.bf16.mxu0 0
    %149 = vmatpush1.bf16.msra.mxu0 0
    %150 = vmatprep.subr.bf16.mxu0 0
    %151 = vmatpush1.bf16.msra.mxu0 0
    %152 = vmatprep.subr.bf16.mxu0 0
    %153 = vmatpush1.bf16.msra.mxu0 0
    %154 = vmatprep.subr.bf16.mxu0 0
    %155 = vmatpush1.bf16.msra.mxu0 0
    %156 = vmatprep.subr.bf16.mxu0 0
    %157 = vmatpush1.bf16.msra.mxu0 0
    %158 = vmatprep.subr.bf16.mxu0 0
    %159 = vmatpush1.bf16.msra.mxu0 0
    %160 = vmatprep.mubr.bf16.mxu0 0
    %161 = vmatmul.mubr.bf16.gmra.mrb[0].mxu0 %v126
    %v162 = vpop.f32.mrb[0].mxu0
    %v163 = vadd.f32 %v97, %v162
    %v164 = vpop.f32.mrb[0].mxu0
    %v165 = vadd.f32 %v101, %v164
    %v166 = vpop.f32.mrb[0].mxu0
    %v167 = vpop.f32.mrb[0].mxu0
    %168 = vdwg.mxu0
    %v169 = vmul.f32 %v163, 0.1
    %v170 = vmul.f32 %v165, 0.1
    %v171 = vmax.f32 %v163, %v169
    %v172 = vmax.f32 %v165, %v170
    %v173 = vpack.c.bf16 %v171, %v171
    %v174 = vpack.c.bf16 %v172, %v172
    %v175 = vld [vmem:[#allocation8] sm:$0xff]
    %v176 = vld [vmem:[#allocation8 + $0x8] sm:$0xff]
    %v177 = vld [vmem:[#allocation8 + $0x10] sm:$0xff]
    %v178 = vld [vmem:[#allocation8 + $0x18] sm:$0xff]
    %v179 = vld [vmem:[#allocation8 + $0x20] sm:$0xff]
    %v180 = vld [vmem:[#allocation8 + $0x28] sm:$0xff]
    %v181 = vld [vmem:[#allocation8 + $0x30] sm:$0xff]
    %v182 = vld [vmem:[#allocation8 + $0x38] sm:$0xff]
    %v183 = vld [vmem:[#allocation8 + $0x40] sm:$0xff]
    %v184 = vld [vmem:[#allocation8 + $0x48] sm:$0xff]
    %v185 = vld [vmem:[#allocation8 + $0x50] sm:$0xff]
    %v186 = vld [vmem:[#allocation8 + $0x58] sm:$0xff]
    %v187 = vld [vmem:[#allocation8 + $0x60] sm:$0xff]
    %v188 = vld [vmem:[#allocation8 + $0x68] sm:$0xff]
    %v189 = vld [vmem:[#allocation8 + $0x70] sm:$0xff]
    %v190 = vld [vmem:[#allocation8 + $0x78] sm:$0xff]
    %v191 = vld [vmem:[#allocation8 + $0x80] sm:$0xff]
    %v192 = vld [vmem:[#allocation8 + $0x88] sm:$0xff]
    %v193 = vld [vmem:[#allocation8 + $0x90] sm:$0xff]
    %v194 = vld [vmem:[#allocation8 + $0x98] sm:$0xff]
    %v195 = vld [vmem:[#allocation8 + $0xa0] sm:$0xff]
    %v196 = vld [vmem:[#allocation8 + $0xa8] sm:$0xff]
    %v197 = vld [vmem:[#allocation8 + $0xb0] sm:$0xff]
    %v198 = vld [vmem:[#allocation8 + $0xb8] sm:$0xff]
    %v199 = vld [vmem:[#allocation8 + $0xc0] sm:$0xff]
    %v200 = vld [vmem:[#allocation8 + $0xc8] sm:$0xff]
    %v201 = vld [vmem:[#allocation8 + $0xd0] sm:$0xff]
    %v202 = vld [vmem:[#allocation8 + $0xd8] sm:$0xff]
    %v203 = vld [vmem:[#allocation8 + $0xe0] sm:$0xff]
    %v204 = vld [vmem:[#allocation8 + $0xe8] sm:$0xff]
    %v205 = vld [vmem:[#allocation8 + $0xf0] sm:$0xff]
    %v206 = vld [vmem:[#allocation8 + $0xf8] sm:$0xff]
    %v207 = vld [vmem:[#allocation10] sm:$0x3]
    %v209 = vlaneseq
    %v210 = vshrl.u32 %v209, 7
    %v211 = vsub.s32 0, %v210
    %v212 = vrot.slane %v207, %v211
    %v213 = vlaneseq
    %v214 = vshrl.u32 %v213, 7
    %v215 = vsub.s32 1, %v214
    %v216 = vrot.slane %v207, %v215
    %v251 = vunpack.c.l.b16 %v175
    %v252 = vunpack.c.h.b16 %v175
    %v253 = vunpack.c.l.b16 %v176
    %v254 = vunpack.c.h.b16 %v176
    %v255 = vunpack.c.l.b16 %v177
    %v256 = vunpack.c.h.b16 %v177
    %v257 = vunpack.c.l.b16 %v178
    %v258 = vunpack.c.h.b16 %v178
    %v259 = vunpack.c.l.b16 %v179
    %v260 = vunpack.c.h.b16 %v179
    %v261 = vunpack.c.l.b16 %v180
    %v262 = vunpack.c.h.b16 %v180
    %v263 = vunpack.c.l.b16 %v181
    %v264 = vunpack.c.h.b16 %v181
    %v265 = vunpack.c.l.b16 %v182
    %v266 = vunpack.c.h.b16 %v182
    %v267 = vunpack.c.l.b16 %v183
    %v268 = vunpack.c.h.b16 %v183
    %v269 = vunpack.c.l.b16 %v184
    %v270 = vunpack.c.h.b16 %v184
    %v271 = vunpack.c.l.b16 %v185
    %v272 = vunpack.c.h.b16 %v185
    %v273 = vunpack.c.l.b16 %v186
    %v274 = vunpack.c.h.b16 %v186
    %v275 = vunpack.c.l.b16 %v187
    %v276 = vunpack.c.h.b16 %v187
    %v277 = vunpack.c.l.b16 %v188
    %v278 = vunpack.c.h.b16 %v188
    %v279 = vunpack.c.l.b16 %v189
    %v280 = vunpack.c.h.b16 %v189
    %v281 = vunpack.c.l.b16 %v190
    %v282 = vunpack.c.h.b16 %v190
    %v283 = vunpack.c.l.b16 %v191
    %v284 = vunpack.c.h.b16 %v191
    %v285 = vunpack.c.l.b16 %v192
    %v286 = vunpack.c.h.b16 %v192
    %v287 = vunpack.c.l.b16 %v193
    %v288 = vunpack.c.h.b16 %v193
    %v289 = vunpack.c.l.b16 %v194
    %v290 = vunpack.c.h.b16 %v194
    %v291 = vunpack.c.l.b16 %v195
    %v292 = vunpack.c.h.b16 %v195
    %v293 = vunpack.c.l.b16 %v196
    %v294 = vunpack.c.h.b16 %v196
    %v295 = vunpack.c.l.b16 %v197
    %v296 = vunpack.c.h.b16 %v197
    %v297 = vunpack.c.l.b16 %v198
    %v298 = vunpack.c.h.b16 %v198
    %v299 = vunpack.c.l.b16 %v199
    %v300 = vunpack.c.h.b16 %v199
    %v301 = vunpack.c.l.b16 %v200
    %v302 = vunpack.c.h.b16 %v200
    %v303 = vunpack.c.l.b16 %v201
    %v304 = vunpack.c.h.b16 %v201
    %v305 = vunpack.c.l.b16 %v202
    %v306 = vunpack.c.h.b16 %v202
    %v307 = vunpack.c.l.b16 %v203
    %v308 = vunpack.c.h.b16 %v203
    %v309 = vunpack.c.l.b16 %v204
    %v310 = vunpack.c.h.b16 %v204
    %v311 = vunpack.c.l.b16 %v205
    %v312 = vunpack.c.h.b16 %v205
    %v313 = vunpack.c.l.b16 %v206
    %v314 = vunpack.c.h.b16 %v206
    %v315 = vpack.c.b16 %v253, %v251
    %v316 = vpack.c.b16 %v254, %v252
    %v317 = vpack.c.b16 %v257, %v255
    %v318 = vpack.c.b16 %v258, %v256
    %v319 = vpack.c.b16 %v261, %v259
    %v320 = vpack.c.b16 %v262, %v260
    %v321 = vpack.c.b16 %v265, %v263
    %v322 = vpack.c.b16 %v266, %v264
    %v323 = vpack.c.b16 %v269, %v267
    %v324 = vpack.c.b16 %v270, %v268
    %v325 = vpack.c.b16 %v273, %v271
    %v326 = vpack.c.b16 %v274, %v272
    %v327 = vpack.c.b16 %v277, %v275
    %v328 = vpack.c.b16 %v278, %v276
    %v329 = vpack.c.b16 %v281, %v279
    %v330 = vpack.c.b16 %v282, %v280
    %v331 = vpack.c.b16 %v285, %v283
    %v332 = vpack.c.b16 %v286, %v284
    %v333 = vpack.c.b16 %v289, %v287
    %v334 = vpack.c.b16 %v290, %v288
    %v335 = vpack.c.b16 %v293, %v291
    %v336 = vpack.c.b16 %v294, %v292
    %v337 = vpack.c.b16 %v297, %v295
    %v338 = vpack.c.b16 %v298, %v296
    %v339 = vpack.c.b16 %v301, %v299
    %v340 = vpack.c.b16 %v302, %v300
    %v341 = vpack.c.b16 %v305, %v303
    %v342 = vpack.c.b16 %v306, %v304
    %v343 = vpack.c.b16 %v309, %v307
    %v344 = vpack.c.b16 %v310, %v308
    %v345 = vpack.c.b16 %v313, %v311
    %v346 = vpack.c.b16 %v314, %v312
    %379 = vmatprep.subr.bf16.mxu0 %v316
    %380 = vmatpush1.bf16.msra.mxu0 %v315
    %381 = vmatprep.subr.bf16.mxu0 %v318
    %382 = vmatpush1.bf16.msra.mxu0 %v317
    %383 = vmatprep.subr.bf16.mxu0 %v320
    %384 = vmatpush1.bf16.msra.mxu0 %v319
    %385 = vmatprep.subr.bf16.mxu0 %v322
    %386 = vmatpush1.bf16.msra.mxu0 %v321
    %387 = vmatprep.subr.bf16.mxu0 %v324
    %388 = vmatpush1.bf16.msra.mxu0 %v323
    %389 = vmatprep.subr.bf16.mxu0 %v326
    %390 = vmatpush1.bf16.msra.mxu0 %v325
    %391 = vmatprep.subr.bf16.mxu0 %v328
    %392 = vmatpush1.bf16.msra.mxu0 %v327
    %393 = vmatprep.subr.bf16.mxu0 %v330
    %394 = vmatpush1.bf16.msra.mxu0 %v329
    %395 = vmatprep.subr.bf16.mxu0 %v332
    %396 = vmatpush1.bf16.msra.mxu0 %v331
    %397 = vmatprep.subr.bf16.mxu0 %v334
    %398 = vmatpush1.bf16.msra.mxu0 %v333
    %399 = vmatprep.subr.bf16.mxu0 %v336
    %400 = vmatpush1.bf16.msra.mxu0 %v335
    %401 = vmatprep.subr.bf16.mxu0 %v338
    %402 = vmatpush1.bf16.msra.mxu0 %v337
    %403 = vmatprep.subr.bf16.mxu0 %v340
    %404 = vmatpush1.bf16.msra.mxu0 %v339
    %405 = vmatprep.subr.bf16.mxu0 %v342
    %406 = vmatpush1.bf16.msra.mxu0 %v341
    %407 = vmatprep.subr.bf16.mxu0 %v344
    %408 = vmatpush1.bf16.msra.mxu0 %v343
    %409 = vmatprep.subr.bf16.mxu0 %v346
    %410 = vmatpush1.bf16.msra.mxu0 %v345
    %411 = vmatprep.mubr.bf16.mxu0 %v174
    %412 = vmatmul.mubr.bf16.gmra.mrb[0].mxu0 %v173
    %v413 = vpop.f32.mrb[0].mxu0
    %v414 = vadd.f32 %v212, %v413
    %v415 = vpop.f32.mrb[0].mxu0
    %v416 = vadd.f32 %v216, %v415
    %v417 = vpop.f32.mrb[0].mxu0
    %v418 = vpop.f32.mrb[0].mxu0
    %419 = vdwg.mxu0
    %v420 = vmul.f32 %v414, 0.1
    %v421 = vmul.f32 %v416, 0.1
    %v422 = vmax.f32 %v414, %v420
    %v423 = vmax.f32 %v416, %v421
    %v426 = vcombine.low %v422, %v423
    %v427 = vcombine.high %v422, %v423
    %v429 = vunpack.c.l.s4 1983009808
    %v430 = vunpack.c.0.s8 %v429
    %v431 = vlaneseq
    %v432 = vshrl.u32 %v431, 7
    %v433 = vsub.s32 %v430, %v432
    %v434 = vrot.slane %v426, %v433
    %v436 = vunpack.c.l.s4 1983009808
    %v437 = vunpack.c.0.s8 %v436
    %v438 = vlaneseq
    %v439 = vshrl.u32 %v438, 7
    %v440 = vsub.s32 %v437, %v439
    %v441 = vrot.slane %v427, %v440
    %v442 = vcombine.high %v434, %v434
    %v443 = vcombine.high %v441, %v441
    %448 = vst [vmem:[#allocation11] sm:$0xf] %v434
    %449 = vst [vmem:[#allocation11 + $0x4] sm:$0xf] %v442
    %450 = vst [vmem:[#allocation11 + $0x8] sm:$0xf] %v441
    %451 = vst [vmem:[#allocation11 + $0xc] sm:$0xf] %v443
    // Predicated region
    $region42: #{tpu_custom_call.1} parent=1 // pred_check
      _
    $region43: #{tpu_custom_call.1} parent=1 // pred_check_branch
      %453 = sbr.rel (0) target = $region45
    $region44: #{tpu_custom_call.1} parent=1 // pred_region
      %s455 = ssub.s32 256, 64
      %456 = vsyncadd [#allocation4], %s455
      %s457 = sshll.u32 [#allocation11], 4
      %s458 = int_to_ptr.vmem [resolvable:$true] %s457
      %463 = dma.vmem_to_hbm [thread:$0]  %s458, 64, %s5, [#allocation4], 64, 64, 4
    $region45: #{tpu_custom_call.1} parent=1 // pred_fallthru
      _
    // Predicated region
    $region46: #{tpu_custom_call.1} parent=1 // pred_check
      _
    $region47: #{tpu_custom_call.1} parent=1 // pred_check_branch
      %465 = sbr.rel (0) target = $region49
    $region48: #{tpu_custom_call.1} parent=1 // pred_region
      %466 = dma.done [#allocation4], 256
    $region49: #{tpu_custom_call.1} parent=1 // pred_fallthru
      _
    %467 = vsyncpa [#allocation3], 1
    %468 = vsyncpa [#allocation6], 1
    %469 = vsyncpa [#allocation9], 1
    %470 = vsyncpa [#allocation4], 1

</llo_original>
